<compile_context>
chip_gen: v7x
topology: tpu7x:2x2x1
jax: 0.10.0
libtpu: 0.0.40
codegen_flags: <defaults>
</compile_context>

<pallas_src>
import math
import functools

import jax
import jax.numpy as jnp
from jax.experimental import pallas as pl
from jax.experimental.pallas import tpu as pltpu


# ----------------------------- parameter setup ------------------------------
def make_pe_table(max_len: int, d_model: int, dtype=jnp.float32):
    """Replicates the `pe` buffer from PositionalEncoding.__init__ -> [max_len, d_model]."""
    position = jnp.arange(max_len, dtype=jnp.float32)[:, None]            # [max_len, 1]
    div_term = jnp.exp(
        jnp.arange(0, d_model, 2, dtype=jnp.float32) * (-math.log(10000.0) / d_model)
    )                                                                     # [d_model//2]
    pe = jnp.zeros((max_len, d_model), dtype=jnp.float32)
    pe = pe.at[:, 0::2].set(jnp.sin(position * div_term))
    pe = pe.at[:, 1::2].set(jnp.cos(position * div_term))
    return pe.astype(dtype)


# ------------------------------ int32 helpers -------------------------------
def _s32(v: int) -> int:
    """Two's-complement reinterpretation of a 32-bit constant as Python int."""
    v &= 0xFFFFFFFF
    return v - (1 << 32) if v >= (1 << 31) else v


_M1 = _s32(0x85EBCA6B)      # murmur3 fmix32 constants
_M2 = _s32(0xC2B2AE35)
_GOLD = _s32(0x9E3779B9)    # golden-ratio seed mixer
_SIGN = _s32(0x80000000)    # sign bit (== -2**31), for unsigned compare via flip


# --------------------------------- kernels ----------------------------------
def _pe_add_kernel(seed_ref, x_ref, pe_ref, o_ref):
    # Eval mode: dropout is identity.
    del seed_ref
    pe = pe_ref[...].astype(x_ref.dtype)          # [TS, D]
    o_ref[...] = x_ref[...] + pe[:, None, :]      # broadcast over batch (sublane) axis


def _pe_add_dropout_kernel(seed_ref, x_ref, pe_ref, o_ref, *, thr_cmp: int, inv_keep: float):
    # Training mode: inverted dropout fused with the PE add.
    ts, b, d = x_ref.shape
    pe = pe_ref[...].astype(x_ref.dtype)
    y = x_ref[...] + pe[:, None, :]

    # Counter-based PRNG: unique global element index per value, hashed with
    # the runtime seed (murmur3 finalizer).  Pure int32 VPU ops -> lowers on
    # TPU Mosaic and in interpret mode alike.
    i0 = jax.lax.broadcasted_iota(jnp.int32, (ts, b, d), 0)
    i1 = jax.lax.broadcasted_iota(jnp.int32, (ts, b, d), 1)
    i2 = jax.lax.broadcasted_iota(jnp.int32, (ts, b, d), 2)
    tile = pl.program_id(0)
    idx = ((tile * ts + i0) * b + i1) * d + i2          # wraps mod 2^32 (fine for a mask)

    h = idx ^ (seed_ref[0] * _GOLD)
    h = h ^ jax.lax.shift_right_logical(h, 16)
    h = h * _M1
    h = h ^ jax.lax.shift_right_logical(h, 13)
    h = h * _M2
    h = h ^ jax.lax.shift_right_logical(h, 16)

    # keep  <=>  (h as uint32) >= round(p * 2^32); unsigned compare done in the
    # signed domain by flipping the sign bit of both sides (order-preserving).
    keep = (h ^ jnp.int32(_SIGN)) >= jnp.int32(thr_cmp)
    scale = jnp.where(keep,
                      jnp.asarray(inv_keep, y.dtype),
                      jnp.asarray(0.0, y.dtype))
    o_ref[...] = y * scale


# --------------------------------- wrapper ----------------------------------
def positional_encoding(x, pe_table, *, p: float = 0.1, training: bool = False, seed=0):
    """x: [S, B, D] -> [S, B, D] ; pe_table: [max_len, D] (float32)."""
    S, B, D = x.shape
    max_len, Dp = pe_table.shape
    assert Dp == D and S <= max_len
    assert 0.0 <= p < 1.0

    itemsize = jnp.dtype(x.dtype).itemsize
    row_bytes = B * D * itemsize
    target_block_bytes = 2 << 20                      # ~2 MiB per x block: fits every gen's
    ts = max(1, target_block_bytes // max(row_bytes, 1))   # scoped VMEM with double buffering
    if S >= 8:
        ts = max(8, (min(ts, S) // 8) * 8)            # sublane-aligned sequence tile
        pe_in = pe_table                              # full [max_len, D]: no wrapper copy
    else:
        ts = S                                        # tiny-S path: block == full dims
        pe_in = pe_table[:S]

    num_tiles = pl.cdiv(S, ts)

    if training and p > 0.0:
        t_u = min(max(int(round(p * (1 << 32))), 0), (1 << 32) - 1)
        kernel = functools.partial(_pe_add_dropout_kernel,
                                   thr_cmp=t_u - (1 << 31),
                                   inv_keep=1.0 / (1.0 - p))
    else:
        kernel = _pe_add_kernel

    seed_arr = jnp.asarray([seed], dtype=jnp.int32)   # runtime scalar -> no recompile per seed

    x_block_bytes = ts * B * D * itemsize
    pe_block_bytes = ts * D * jnp.dtype(pe_in.dtype).itemsize
    # 2 buffers each for x-in and out, 2 for pe, plus margin (capped well under
    # the v7x 64 MiB physical VMEM by construction of ts).
    vmem_limit = int(max(4 * x_block_bytes + 2 * pe_block_bytes + (2 << 20), 16 << 20))

    grid_spec = pltpu.PrefetchScalarGridSpec(
        num_scalar_prefetch=1,                        # seed lands in SMEM
        grid=(num_tiles,),
        in_specs=[
            pl.BlockSpec((ts, B, D), lambda i, seed_ref: (i, 0, 0)),
            pl.BlockSpec((ts, D),    lambda i, seed_ref: (i, 0)),
        ],
        out_specs=pl.BlockSpec((ts, B, D), lambda i, seed_ref: (i, 0, 0)),
    )

    return pl.pallas_call(
        kernel,
        out_shape=jax.ShapeDtypeStruct((S, B, D), x.dtype),
        grid_spec=grid_spec,
        compiler_params=pltpu.CompilerParams(
            dimension_semantics=("parallel",),        # lets v7x use both TensorCores
            vmem_limit_bytes=vmem_limit,
        ),
    )(seed_arr, x, pe_in)


# ----------------------------------- demo -----------------------------------
if __name__ == "__main__":
    SEQ, BATCH, D_MODEL, MAX_LEN = 8, 2, 32, 64

    key = jax.random.PRNGKey(0)
    x = jax.random.normal(key, (SEQ, BATCH, D_MODEL), dtype=jnp.float32)
    pe_table = make_pe_table(MAX_LEN, D_MODEL)

    # Eval mode (dropout = identity): must match x + pe[:S] exactly.
    out = jax.block_until_ready(positional_encoding(x, pe_table, p=0.1, training=False))
    ref = x + pe_table[:SEQ][:, None, :]
    assert out.shape == (SEQ, BATCH, D_MODEL)
    assert jnp.allclose(out, ref, atol=1e-6, rtol=1e-6), "eval-mode mismatch vs reference"

    # Training mode: inverted dropout (zero w.p. p, survivors scaled by 1/(1-p)).
    p = 0.1
    out_tr = jax.block_until_ready(
        positional_encoding(x, pe_table, p=p, training=True, seed=1234))
    assert out_tr.shape == (SEQ, BATCH, D_MODEL)
    kept = out_tr != 0.0
    assert jnp.allclose(jnp.where(kept, out_tr, 0.0),
                        jnp.where(kept, ref * (1.0 / (1.0 - p)), 0.0),
                        atol=1e-5, rtol=1e-5), "training-mode kept values mismatch"
    drop_frac = float(jnp.mean((~kept).astype(jnp.float32)))
    assert 0.0 <= drop_frac < 0.5, f"implausible drop fraction {drop_frac}"

    # TODO(synk): exact bitwise reproduction of torch.nn.Dropout's RNG stream is
    # not possible; semantics (Bernoulli keep, 1/(1-p) scaling) are matched.
    print("KERNEL_OK")
</pallas_src>

<mosaic_0001>
module attributes {stable_mosaic.version = 11 : i64} {
  func.func @_pe_add_kernel(%arg0: i32, %arg1: memref<1xi32, #tpu.memory_space<smem>>, %arg2: memref<8x2x32xf32, #tpu.memory_space<vmem>>, %arg3: memref<8x32xf32, #tpu.memory_space<vmem>>, %arg4: memref<8x2x32xf32, #tpu.memory_space<vmem>>) attributes {dimension_semantics = [#tpu.dimension_semantics<parallel>], iteration_bounds = array<i64: 1>, scalar_prefetch = 1 : i64, scratch_operands = 0 : i64, tpu.core_type = #tpu.core_type<tc>, window_params = [{transform_indices = @transform_0, window_bounds = array<i64: 8, 2, 32>}, {transform_indices = @transform_1, window_bounds = array<i64: 8, 32>}, {transform_indices = @transform_2, window_bounds = array<i64: 8, 2, 32>}]} {
    %c0 = arith.constant 0 : index
    %c0_0 = arith.constant 0 : index
    %0 = vector.load %arg3[%c0, %c0_0] : memref<8x32xf32, #tpu.memory_space<vmem>>, vector<8x32xf32>
    %c0_1 = arith.constant 0 : index
    %c0_2 = arith.constant 0 : index
    %c0_3 = arith.constant 0 : index
    %1 = vector.load %arg2[%c0_1, %c0_2, %c0_3] : memref<8x2x32xf32, #tpu.memory_space<vmem>>, vector<8x2x32xf32>
    %2 = vector.shape_cast %0 : vector<8x32xf32> to vector<8x1x32xf32>
    %3 = vector.broadcast %2 : vector<8x1x32xf32> to vector<8x2x32xf32>
    %4 = arith.addf %1, %3 : vector<8x2x32xf32>
    %c0_4 = arith.constant 0 : index
    %c0_5 = arith.constant 0 : index
    %c0_6 = arith.constant 0 : index
    %5 = vector.load %arg4[%c0_4, %c0_5, %c0_6] : memref<8x2x32xf32, #tpu.memory_space<vmem>>, vector<8x2x32xf32>
    tpu.vector_store %arg4[%c0_4, %c0_5, %c0_6], %4 {strides = array<i32>} : memref<8x2x32xf32, #tpu.memory_space<vmem>>, vector<8x2x32xf32>,
    return
  }
  func.func @transform_0(%arg0: i32, %arg1: memref<1xi32, #tpu.memory_space<smem>>) -> (i32, i32, i32) {
    %c0_i32 = arith.constant 0 : i32
    %c0_i32_0 = arith.constant 0 : i32
    %c0_i32_1 = arith.constant 0 : i32
    return %arg0, %c0_i32, %c0_i32_0 : i32, i32, i32
  }
  func.func @transform_1(%arg0: i32, %arg1: memref<1xi32, #tpu.memory_space<smem>>) -> (i32, i32) {
    %c0_i32 = arith.constant 0 : i32
    %c0_i32_0 = arith.constant 0 : i32
    return %arg0, %c0_i32 : i32, i32
  }
  func.func @transform_2(%arg0: i32, %arg1: memref<1xi32, #tpu.memory_space<smem>>) -> (i32, i32, i32) {
    %c0_i32 = arith.constant 0 : i32
    %c0_i32_0 = arith.constant 0 : i32
    %c0_i32_1 = arith.constant 0 : i32
    return %arg0, %c0_i32, %c0_i32_0 : i32, i32, i32
  }
}

</mosaic_0001>

<llo_original>
// kernel: tpu_custom_call.1
$region0: #{tpu_custom_call.1}
  #allocation0 [shape = 'u32[]', space=smem, size = 0x4, offset = 0x4, fixed_abs, tag = 'smem constant byte address 0x4 - core index']
  #allocation1 [shape = 'u32[144,128]{1,0:T(1,128)}', space=vmem, size = 0x12000, scoped, tag = 'internal scratch']
  #allocation2 [shape = 's32[1]{0}', space=sflag, size = 0x4, scoped, tag = 'scoped memory for tpu_custom_call.1']
  #allocation3 [shape = 's32[1]{0:T(128)S(6)}', space=smem, size = 0x200, scoped, tag = 'prefetched SMEM operand 0']
  %s0 = inlined_call_operand.<no memory space> [shape: s32[1], index: 0, kind: input, shape index: {}]
  %s1 = inlined_call_operand.vmem [shape: f32[8,2,32], index: 1, kind: input, shape index: {}]
  %s2 = inlined_call_operand.vmem [shape: f32[64,32], index: 2, kind: input, shape index: {}]
  %s3 = inlined_call_operand.hbm [shape: f32[8,2,32], index: 3, kind: output, shape index: {}]
  %s4 = sld [smem:[#allocation0]]
  $region18: #{tpu_custom_call.1} parent=0
    _
  %s6 = ssub.s32 1, %s4
  %s7 = scalar_select 0, %s6, %s4
  %8 = sst [smem:[#allocation3]] %s0
  $region1: #{tpu_custom_call.1} parent=0
    #allocation4 [shape = 'u8[8192]{0}', space=vmem, size = 0x2000, scoped, tag = 'output window, operand 0, single buffered']
    #allocation5 [shape = 's32[1]{0}', space=sflag, size = 0x4, scoped, tag = 'scoped memory for tpu_custom_call.1']
    %9 = vsyncpa [#allocation5], 0
    // Predicated region
    $region2: #{tpu_custom_call.1} parent=1 // pred_check
      _
    $region3: #{tpu_custom_call.1} parent=1 // pred_check_branch
      %11 = sbr.rel (0) target = $region5
    $region4: #{tpu_custom_call.1} parent=1 // pred_region
      _
    $region5: #{tpu_custom_call.1} parent=1 // pred_fallthru
      _
    // Predicated region
    $region6: #{tpu_custom_call.1} parent=1 // pred_check
      _
    $region7: #{tpu_custom_call.1} parent=1 // pred_check_branch
      %13 = sbr.rel (0) target = $region9
    $region8: #{tpu_custom_call.1} parent=1 // pred_region
      _
    $region9: #{tpu_custom_call.1} parent=1 // pred_fallthru
      _
    %v14 = vld [vmem:[%s2] sm:$0xff]
    %v15 = vld [vmem:[%s1] sm:$0x3]
    %v16 = vld [vmem:[%s1 + $0x2] sm:$0x3]
    %v17 = vld [vmem:[%s1 + $0x4] sm:$0x3]
    %v18 = vld [vmem:[%s1 + $0x6] sm:$0x3]
    %v19 = vld [vmem:[%s1 + $0x8] sm:$0x3]
    %v20 = vld [vmem:[%s1 + $0xa] sm:$0x3]
    %v21 = vld [vmem:[%s1 + $0xc] sm:$0x3]
    %v22 = vld [vmem:[%s1 + $0xe] sm:$0x3]
    %v24 = vcombine.high %v14, %v14
    %v26 = vunpack.c.l.s4 1966171168
    %v27 = vunpack.c.0.s8 %v26
    %v28 = vlaneseq
    %v29 = vshrl.u32 %v28, 7
    %v30 = vsub.s32 %v27, %v29
    %v31 = vrot.slane %v14, %v30
    %v33 = vunpack.c.l.s4 1966171168
    %v34 = vunpack.c.0.s8 %v33
    %v35 = vlaneseq
    %v36 = vshrl.u32 %v35, 7
    %v37 = vsub.s32 %v34, %v36
    %v38 = vrot.slane %v24, %v37
    %v39 = vcombine.high %v31, %v31
    %v40 = vcombine.high %v38, %v38
    %v42 = vunpack.c.l.s4 1966171168
    %v43 = vunpack.c.0.s8 %v42
    %v44 = vlaneseq
    %v45 = vshrl.u32 %v44, 7
    %v46 = vsub.s32 %v43, %v45
    %v47 = vrot.slane %v31, %v46
    %v49 = vunpack.c.l.s4 1966171168
    %v50 = vunpack.c.0.s8 %v49
    %v51 = vlaneseq
    %v52 = vshrl.u32 %v51, 7
    %v53 = vsub.s32 %v50, %v52
    %v54 = vrot.slane %v38, %v53
    %v56 = vunpack.c.l.s4 1966171168
    %v57 = vunpack.c.0.s8 %v56
    %v58 = vlaneseq
    %v59 = vshrl.u32 %v58, 7
    %v60 = vsub.s32 %v57, %v59
    %v61 = vrot.slane %v39, %v60
    %v63 = vunpack.c.l.s4 1966171168
    %v64 = vunpack.c.0.s8 %v63
    %v65 = vlaneseq
    %v66 = vshrl.u32 %v65, 7
    %v67 = vsub.s32 %v64, %v66
    %v68 = vrot.slane %v40, %v67
    %v69 = vcombine.high %v47, %v47
    %v70 = vcombine.high %v54, %v54
    %v71 = vcombine.high %v61, %v61
    %v72 = vcombine.high %v68, %v68
    %v73 = vlaneseq
    %v74 = vshrl.u32 %v73, 7
    %v75 = vsub.s32 0, %v74
    %v76 = vrot.slane %v47, %v75
    %v77 = vlaneseq
    %v78 = vshrl.u32 %v77, 7
    %v79 = vsub.s32 0, %v78
    %v80 = vrot.slane %v61, %v79
    %v81 = vlaneseq
    %v82 = vshrl.u32 %v81, 7
    %v83 = vsub.s32 0, %v82
    %v84 = vrot.slane %v69, %v83
    %v85 = vlaneseq
    %v86 = vshrl.u32 %v85, 7
    %v87 = vsub.s32 0, %v86
    %v88 = vrot.slane %v71, %v87
    %v89 = vlaneseq
    %v90 = vshrl.u32 %v89, 7
    %v91 = vsub.s32 0, %v90
    %v92 = vrot.slane %v54, %v91
    %v93 = vlaneseq
    %v94 = vshrl.u32 %v93, 7
    %v95 = vsub.s32 0, %v94
    %v96 = vrot.slane %v68, %v95
    %v97 = vlaneseq
    %v98 = vshrl.u32 %v97, 7
    %v99 = vsub.s32 0, %v98
    %v100 = vrot.slane %v70, %v99
    %v101 = vlaneseq
    %v102 = vshrl.u32 %v101, 7
    %v103 = vsub.s32 0, %v102
    %v104 = vrot.slane %v72, %v103
    %v113 = vadd.f32 %v15, %v76
    %v114 = vadd.f32 %v16, %v80
    %v115 = vadd.f32 %v17, %v84
    %v116 = vadd.f32 %v18, %v88
    %v117 = vadd.f32 %v19, %v92
    %v118 = vadd.f32 %v20, %v96
    %v119 = vadd.f32 %v21, %v100
    %v120 = vadd.f32 %v22, %v104
    %vm121 = vcmask 254976
    %122 = vst.msk [vmem:[#allocation4] sm:$0x3] %vm121, %v113
    %123 = vst.msk [vmem:[#allocation4 + $0x2] sm:$0x3] %vm121, %v114
    %124 = vst.msk [vmem:[#allocation4 + $0x4] sm:$0x3] %vm121, %v115
    %125 = vst.msk [vmem:[#allocation4 + $0x6] sm:$0x3] %vm121, %v116
    %126 = vst.msk [vmem:[#allocation4 + $0x8] sm:$0x3] %vm121, %v117
    %127 = vst.msk [vmem:[#allocation4 + $0xa] sm:$0x3] %vm121, %v118
    %128 = vst.msk [vmem:[#allocation4 + $0xc] sm:$0x3] %vm121, %v119
    %129 = vst.msk [vmem:[#allocation4 + $0xe] sm:$0x3] %vm121, %v120
    // Predicated region
    $region10: #{tpu_custom_call.1} parent=1 // pred_check
      _
    $region11: #{tpu_custom_call.1} parent=1 // pred_check_branch
      %131 = sbr.rel (0) target = $region13
    $region12: #{tpu_custom_call.1} parent=1 // pred_region
      %s133 = ssub.s32 256, 256
      %134 = vsyncadd [#allocation5], %s133
      %s135 = sshll.u32 [#allocation4], 4
      %s136 = int_to_ptr.vmem [resolvable:$true] %s135
      %141 = dma.vmem_to_hbm [thread:$0]  %s136, 256, %s3, [#allocation5], 32, 32, 2
    $region13: #{tpu_custom_call.1} parent=1 // pred_fallthru
      _
    // Predicated region
    $region14: #{tpu_custom_call.1} parent=1 // pred_check
      _
    $region15: #{tpu_custom_call.1} parent=1 // pred_check_branch
      %143 = sbr.rel (0) target = $region17
    $region16: #{tpu_custom_call.1} parent=1 // pred_region
      %144 = dma.done [#allocation5], 256
    $region17: #{tpu_custom_call.1} parent=1 // pred_fallthru
      _
    %145 = vsyncpa [#allocation5], 1

</llo_original>
